<compile_context>
chip_gen: v5e
topology: v5e:2x2
jax: 0.10.0
libtpu: 0.0.40
codegen_flags: <defaults>
</compile_context>

<pallas_src>
import numpy as np
import jax
import jax.numpy as jnp
from jax import lax
from jax.experimental import pallas as pl
from jax.experimental.pallas import tpu as pltpu

# ----------------------------- configuration --------------------------------
B         = 2
IN_CHANS  = 3          # module default
IMG       = 32         # small image (module default img_size=224 scaled down)
PATCH     = 7          # module default patch_size
STRIDE    = 4          # module default stride
EMBED     = 128        # embed_dim (kept lane-dense: multiple of 128)
EPS       = 1e-5       # nn.LayerNorm default

HOUT = IMG // STRIDE                 # 8
WOUT = IMG // STRIDE                 # 8
N    = HOUT * WOUT                   # 64 tokens per image
M    = B * N                         # 128: batch folded into the matmul M dim
S2D  = STRIDE * STRIDE * IN_CHANS    # 48: depth of one space-to-depth super pixel
K    = 4 * S2D                       # 192: im2col depth (2x2 super-pixel window)
KPAD = 256                           # K zero-padded to a lane multiple (contributes 0)
HQ   = HOUT + 1                      # 9 space-to-depth rows (halo block row)
WQ   = WOUT + 1                      # 9

assert PATCH <= 2 * STRIDE, "2x2-block decomposition requires patch_size <= 2*stride"
assert EMBED % 128 == 0 and KPAD % 128 == 0 and M % 8 == 0


# --------------------------------- kernel -----------------------------------
def patch_embed_kernel(x_ref, w_ref, sb_ref, o_ref):
    """Whole batch in one step.

    x_ref : (M, KPAD)     im2col LHS (zero-padded depth), lane-dense
    w_ref : (KPAD, EMBED) packed conv weights (zero rows for padded taps/depth)
    sb_ref: (3, EMBED)    rows = [conv bias, LN gamma, LN beta]
    o_ref : (M, EMBED)    output tokens (lane-dense, 128 lanes)
    """
    # Convolution == one MXU matmul (f32 accumulation).
    y = jnp.dot(x_ref[...], w_ref[...], preferred_element_type=jnp.float32)
    y = y + sb_ref[0:1, :]                      # conv bias

    # LayerNorm over embed_dim (lanes): two independent XLU reductions.
    inv_e = 1.0 / EMBED
    mu  = jnp.sum(y, axis=-1, keepdims=True) * inv_e
    ms  = jnp.sum(y * y, axis=-1, keepdims=True) * inv_e
    var = ms - mu * mu
    o_ref[...] = (y - mu) * lax.rsqrt(var + EPS) * sb_ref[1:2, :] + sb_ref[2:3, :]


# --------------------------- one-time param packing --------------------------
def pack_params(conv_w, conv_b, ln_g, ln_b):
    """Pack conv/LN parameters once at init time (not per forward call)."""
    E, C = conv_w.shape[0], conv_w.shape[1]
    # Zero-pad the 7x7 kernel to 8x8 (tap row/col 8 unused -> weights 0).
    we = jnp.zeros((E, C, 2 * STRIDE, 2 * STRIDE), jnp.float32)
    we = we.at[:, :, :PATCH, :PATCH].set(conv_w.astype(jnp.float32))
    # (e, c, p, ir, q, jr) -> (p, q, ir, jr, c, e) -> (4*S2D, E); order matches LHS.
    w = (we.reshape(E, C, 2, STRIDE, 2, STRIDE)
           .transpose(2, 4, 3, 5, 1, 0)
           .reshape(K, E))
    w = jnp.pad(w, ((0, KPAD - K), (0, 0)))                    # (KPAD, E), zero tail
    sb = jnp.stack([conv_b, ln_g, ln_b], axis=0).astype(jnp.float32)   # (3, E)
    return w, sb


# ------------------------------- forward -------------------------------------
@jax.jit
def overlap_patch_embed(x, w_pack, sb):
    """x: (B, IN_CHANS, IMG, IMG) f32. Returns (tokens (B, N, EMBED), H, W)."""
    Bsz, C, Hin, Win = x.shape

    # ---- layout plumbing only (fused under this jit): pad + space-to-depth ----
    pad_before = PATCH // 2                                    # 3
    pad_after_h = STRIDE * HQ - Hin - pad_before               # drop unused conv pad rows
    pad_after_w = STRIDE * WQ - Win - pad_before
    xp = jnp.pad(x, ((0, 0), (0, 0),
                     (pad_before, pad_after_h), (pad_before, pad_after_w)))
    x8 = (xp.transpose(0, 2, 3, 1)                             # (B, 36, 36, C)
            .reshape(Bsz, HQ, STRIDE, WQ, STRIDE, C)
            .transpose(0, 1, 3, 2, 4, 5)                       # (b, iq, jq, ir, jr, c)
            .reshape(Bsz, HQ, WQ, S2D))
    # Finish im2col: concat the four shifted 2x2-block views along depth,
    # fold batch into M, zero-pad K to a lane multiple.
    lhs = jnp.concatenate(
        [x8[:, p:p + HOUT, q:q + WOUT, :] for p in range(2) for q in range(2)],
        axis=-1).reshape(Bsz * N, K)                           # (128, 192)
    lhs = jnp.pad(lhs, ((0, 0), (0, KPAD - K)))                # (128, 256)

    out = pl.pallas_call(
        patch_embed_kernel,
        out_shape=jax.ShapeDtypeStruct((Bsz * N, EMBED), jnp.float32),
        grid_spec=pltpu.PrefetchScalarGridSpec(
            num_scalar_prefetch=0,
            grid=(1,),                                         # single step, single TC
            in_specs=[
                pl.BlockSpec((Bsz * N, KPAD), lambda i: (0, 0)),
                pl.BlockSpec((KPAD, EMBED), lambda i: (0, 0)),
                pl.BlockSpec((3, EMBED), lambda i: (0, 0)),
            ],
            out_specs=pl.BlockSpec((Bsz * N, EMBED), lambda i: (0, 0)),
        ),
        compiler_params=pltpu.CompilerParams(
            dimension_semantics=("arbitrary",)),
    )(lhs, w_pack, sb)

    return out.reshape(Bsz, N, EMBED), HOUT, WOUT


# --------------------------- pure-JAX reference ------------------------------
def reference(x, conv_w, conv_b, ln_g, ln_b):
    y = lax.conv_general_dilated(
        x, conv_w, window_strides=(STRIDE, STRIDE),
        padding=((PATCH // 2, PATCH // 2), (PATCH // 2, PATCH // 2)),
        dimension_numbers=('NCHW', 'OIHW', 'NCHW'),
        precision=lax.Precision.HIGHEST)
    y = y + conv_b[None, :, None, None]
    Bsz, E, Ho, Wo = y.shape
    y = y.reshape(Bsz, E, Ho * Wo).transpose(0, 2, 1)          # (B, N, E)
    mu = y.mean(-1, keepdims=True)
    var = ((y - mu) ** 2).mean(-1, keepdims=True)
    return (y - mu) / jnp.sqrt(var + EPS) * ln_g + ln_b


# --------------------------------- main --------------------------------------
if __name__ == "__main__":
    key = jax.random.PRNGKey(0)
    k1, k2, k3, k4, k5 = jax.random.split(key, 5)

    x      = jax.random.normal(k1, (B, IN_CHANS, IMG, IMG), dtype=jnp.float32)
    conv_w = 0.05 * jax.random.normal(k2, (EMBED, IN_CHANS, PATCH, PATCH), dtype=jnp.float32)
    conv_b = 0.05 * jax.random.normal(k3, (EMBED,), dtype=jnp.float32)
    ln_g   = 1.0 + 0.05 * jax.random.normal(k4, (EMBED,), dtype=jnp.float32)
    ln_b   = 0.05 * jax.random.normal(k5, (EMBED,), dtype=jnp.float32)

    # One-time parameter packing (init time, not per forward).
    w_pack, sb = pack_params(conv_w, conv_b, ln_g, ln_b)
    w_pack = jax.block_until_ready(w_pack)

    out, Ho, Wo = overlap_patch_embed(x, w_pack, sb)
    out = jax.block_until_ready(out)

    ref = reference(x, conv_w, conv_b, ln_g, ln_b)
    np.testing.assert_allclose(np.asarray(out), np.asarray(ref), atol=2e-3, rtol=2e-3)
    assert (Ho, Wo) == (HOUT, WOUT)

    print("KERNEL_OK")
</pallas_src>

<mosaic_0001>
module attributes {stable_mosaic.version = 11 : i64} {
  func.func @patch_embed_kernel(%arg0: i32, %arg1: memref<128x256xf32, #tpu.memory_space<vmem>>, %arg2: memref<256x128xf32, #tpu.memory_space<vmem>>, %arg3: memref<3x128xf32, #tpu.memory_space<vmem>>, %arg4: memref<128x128xf32, #tpu.memory_space<vmem>>) attributes {dimension_semantics = [#tpu.dimension_semantics<arbitrary>], iteration_bounds = array<i64: 1>, scalar_prefetch = 0 : i64, scratch_operands = 0 : i64, tpu.core_type = #tpu.core_type<tc>, window_params = [{pipeline_mode = #tpu.pipeline_mode<synchronous>, transform_indices = @transform_0, window_bounds = array<i64: 128, 256>}, {pipeline_mode = #tpu.pipeline_mode<synchronous>, transform_indices = @transform_1, window_bounds = array<i64: 256, 128>}, {pipeline_mode = #tpu.pipeline_mode<synchronous>, transform_indices = @transform_2, window_bounds = array<i64: 3, 128>}, {pipeline_mode = #tpu.pipeline_mode<synchronous>, transform_indices = @transform_3, window_bounds = array<i64: 128, 128>}]} {
    %c0 = arith.constant 0 : index
    %c0_0 = arith.constant 0 : index
    %0 = vector.load %arg1[%c0, %c0_0] : memref<128x256xf32, #tpu.memory_space<vmem>>, vector<128x256xf32>
    %c0_1 = arith.constant 0 : index
    %c0_2 = arith.constant 0 : index
    %1 = vector.load %arg2[%c0_1, %c0_2] : memref<256x128xf32, #tpu.memory_space<vmem>>, vector<256x128xf32>
    %cst = arith.constant dense<0.000000e+00> : vector<128x128xf32>
    %2 = tpu.matmul %0, %1, %cst {dimension_numbers = #tpu.dot_dimension_numbers<[1], [0], [0], [1], [0, 0, 1, 1], [], []>} : vector<128x256xf32>, vector<256x128xf32>, vector<128x128xf32> -> vector<128x128xf32>
    %c0_3 = arith.constant 0 : index
    %c0_4 = arith.constant 0 : index
    %3 = vector.load %arg3[%c0_3, %c0_4] : memref<3x128xf32, #tpu.memory_space<vmem>>, vector<1x128xf32>
    %4 = vector.broadcast %3 : vector<1x128xf32> to vector<128x128xf32>
    %5 = arith.addf %2, %4 : vector<128x128xf32>
    %cst_5 = arith.constant dense<0.000000e+00> : vector<128xf32>
    %6 = vector.multi_reduction <add>, %5, %cst_5 [1] : vector<128x128xf32> to vector<128xf32>
    %7 = vector.shape_cast %6 : vector<128xf32> to vector<128x1xf32>
    %cst_6 = arith.constant 7.812500e-03 : f32
    %8 = vector.broadcast %cst_6 : f32 to vector<128x1xf32>
    %9 = arith.mulf %7, %8 : vector<128x1xf32>
    %10 = arith.mulf %5, %5 : vector<128x128xf32>
    %cst_7 = arith.constant dense<0.000000e+00> : vector<128xf32>
    %11 = vector.multi_reduction <add>, %10, %cst_7 [1] : vector<128x128xf32> to vector<128xf32>
    %12 = vector.shape_cast %11 : vector<128xf32> to vector<128x1xf32>
    %cst_8 = arith.constant 7.812500e-03 : f32
    %13 = vector.broadcast %cst_8 : f32 to vector<128x1xf32>
    %14 = arith.mulf %12, %13 : vector<128x1xf32>
    %15 = arith.mulf %9, %9 : vector<128x1xf32>
    %16 = arith.subf %14, %15 : vector<128x1xf32>
    %17 = vector.broadcast %9 : vector<128x1xf32> to vector<128x128xf32>
    %18 = arith.subf %5, %17 : vector<128x128xf32>
    %cst_9 = arith.constant 9.99999974E-6 : f32
    %19 = vector.broadcast %cst_9 : f32 to vector<128x1xf32>
    %20 = arith.addf %16, %19 : vector<128x1xf32>
    %21 = math.rsqrt %20 : vector<128x1xf32>
    %22 = vector.broadcast %21 : vector<128x1xf32> to vector<128x128xf32>
    %23 = arith.mulf %18, %22 : vector<128x128xf32>
    %c1 = arith.constant 1 : index
    %c0_10 = arith.constant 0 : index
    %24 = vector.load %arg3[%c1, %c0_10] : memref<3x128xf32, #tpu.memory_space<vmem>>, vector<1x128xf32>
    %25 = vector.broadcast %24 : vector<1x128xf32> to vector<128x128xf32>
    %26 = arith.mulf %23, %25 : vector<128x128xf32>
    %c2 = arith.constant 2 : index
    %c0_11 = arith.constant 0 : index
    %27 = vector.load %arg3[%c2, %c0_11] : memref<3x128xf32, #tpu.memory_space<vmem>>, vector<1x128xf32>
    %28 = vector.broadcast %27 : vector<1x128xf32> to vector<128x128xf32>
    %29 = arith.addf %26, %28 : vector<128x128xf32>
    %c0_12 = arith.constant 0 : index
    %c0_13 = arith.constant 0 : index
    %30 = vector.load %arg4[%c0_12, %c0_13] : memref<128x128xf32, #tpu.memory_space<vmem>>, vector<128x128xf32>
    tpu.vector_store %arg4[%c0_12, %c0_13], %29 {strides = array<i32>} : memref<128x128xf32, #tpu.memory_space<vmem>>, vector<128x128xf32>,
    return
  }
  func.func @transform_0(%arg0: i32) -> (i32, i32) {
    %c0_i32 = arith.constant 0 : i32
    %c0_i32_0 = arith.constant 0 : i32
    %c0_i32_1 = arith.constant 0 : i32
    return %c0_i32, %c0_i32_0 : i32, i32
  }
  func.func @transform_1(%arg0: i32) -> (i32, i32) {
    %c0_i32 = arith.constant 0 : i32
    %c0_i32_0 = arith.constant 0 : i32
    %c0_i32_1 = arith.constant 0 : i32
    return %c0_i32, %c0_i32_0 : i32, i32
  }
  func.func @transform_2(%arg0: i32) -> (i32, i32) {
    %c0_i32 = arith.constant 0 : i32
    %c0_i32_0 = arith.constant 0 : i32
    %c0_i32_1 = arith.constant 0 : i32
    return %c0_i32, %c0_i32_0 : i32, i32
  }
  func.func @transform_3(%arg0: i32) -> (i32, i32) {
    %c0_i32 = arith.constant 0 : i32
    %c0_i32_0 = arith.constant 0 : i32
    %c0_i32_1 = arith.constant 0 : i32
    return %c0_i32, %c0_i32_0 : i32, i32
  }
}

</mosaic_0001>

<llo_original>
// kernel: overlap_patch_embed.1
$region0: #{overlap_patch_embed.1}
  #allocation0 [shape = 'u32[]', space=smem, size = 0x4, offset = 0x4, fixed_abs, tag = 'smem constant byte address 0x4 - core index']
  #allocation1 [shape = 'u32[72,128]{1,0:T(1,128)}', space=vmem, size = 0x9000, scoped, tag = 'internal scratch']
  %s0 = inlined_call_operand.vmem [shape: f32[128,256], index: 0, kind: input, shape index: {}]
  %s1 = inlined_call_operand.vmem [shape: f32[256,128], index: 1, kind: input, shape index: {}]
  %s2 = inlined_call_operand.vmem [shape: f32[3,128], index: 2, kind: input, shape index: {}]
  %s3 = inlined_call_operand.hbm [shape: f32[128,128], index: 3, kind: output, shape index: {}]
  %s4 = sld [smem:[#allocation0]]
  $region22: #{overlap_patch_embed.1} parent=0
    _
  %s6 = ssub.s32 1, %s4
  %s7 = scalar_select 0, %s6, %s4
  $region1: #{overlap_patch_embed.1} parent=0
    #allocation2 [shape = 'u8[65536]{0}', space=vmem, size = 0x10000, scoped, tag = 'output window, operand 0, single buffered']
    #allocation3 [shape = 's32[1]{0}', space=sflag, size = 0x4, scoped, tag = 'scoped memory for overlap_patch_embed.1']
    %8 = vsyncpa [#allocation3], 0
    // Predicated region
    $region2: #{overlap_patch_embed.1} parent=1 // pred_check
      _
    $region3: #{overlap_patch_embed.1} parent=1 // pred_check_branch
      %10 = sbr.rel (0) target = $region5
    $region4: #{overlap_patch_embed.1} parent=1 // pred_region
      _
    $region5: #{overlap_patch_embed.1} parent=1 // pred_fallthru
      _
    // Predicated region
    $region6: #{overlap_patch_embed.1} parent=1 // pred_check
      _
    $region7: #{overlap_patch_embed.1} parent=1 // pred_check_branch
      %12 = sbr.rel (0) target = $region9
    $region8: #{overlap_patch_embed.1} parent=1 // pred_region
      _
    $region9: #{overlap_patch_embed.1} parent=1 // pred_fallthru
      _
    // Predicated region
    $region10: #{overlap_patch_embed.1} parent=1 // pred_check
      _
    $region11: #{overlap_patch_embed.1} parent=1 // pred_check_branch
      %14 = sbr.rel (0) target = $region13
    $region12: #{overlap_patch_embed.1} parent=1 // pred_region
      _
    $region13: #{overlap_patch_embed.1} parent=1 // pred_fallthru
      _
    %v15 = vld [vmem:[%s0] sm:$0xff]
    %v16 = vld [vmem:[%s0 + $0x8] sm:$0xff]
    %v17 = vld [vmem:[%s0 + $0x10] sm:$0xff]
    %v18 = vld [vmem:[%s0 + $0x18] sm:$0xff]
    %v19 = vld [vmem:[%s0 + $0x20] sm:$0xff]
    %v20 = vld [vmem:[%s0 + $0x28] sm:$0xff]
    %v21 = vld [vmem:[%s0 + $0x30] sm:$0xff]
    %v22 = vld [vmem:[%s0 + $0x38] sm:$0xff]
    %v23 = vld [vmem:[%s0 + $0x40] sm:$0xff]
    %v24 = vld [vmem:[%s0 + $0x48] sm:$0xff]
    %v25 = vld [vmem:[%s0 + $0x50] sm:$0xff]
    %v26 = vld [vmem:[%s0 + $0x58] sm:$0xff]
    %v27 = vld [vmem:[%s0 + $0x60] sm:$0xff]
    %v28 = vld [vmem:[%s0 + $0x68] sm:$0xff]
    %v29 = vld [vmem:[%s0 + $0x70] sm:$0xff]
    %v30 = vld [vmem:[%s0 + $0x78] sm:$0xff]
    %v31 = vld [vmem:[%s0 + $0x80] sm:$0xff]
    %v32 = vld [vmem:[%s0 + $0x88] sm:$0xff]
    %v33 = vld [vmem:[%s0 + $0x90] sm:$0xff]
    %v34 = vld [vmem:[%s0 + $0x98] sm:$0xff]
    %v35 = vld [vmem:[%s0 + $0xa0] sm:$0xff]
    %v36 = vld [vmem:[%s0 + $0xa8] sm:$0xff]
    %v37 = vld [vmem:[%s0 + $0xb0] sm:$0xff]
    %v38 = vld [vmem:[%s0 + $0xb8] sm:$0xff]
    %v39 = vld [vmem:[%s0 + $0xc0] sm:$0xff]
    %v40 = vld [vmem:[%s0 + $0xc8] sm:$0xff]
    %v41 = vld [vmem:[%s0 + $0xd0] sm:$0xff]
    %v42 = vld [vmem:[%s0 + $0xd8] sm:$0xff]
    %v43 = vld [vmem:[%s0 + $0xe0] sm:$0xff]
    %v44 = vld [vmem:[%s0 + $0xe8] sm:$0xff]
    %v45 = vld [vmem:[%s0 + $0xf0] sm:$0xff]
    %v46 = vld [vmem:[%s0 + $0xf8] sm:$0xff]
    %v47 = vld [vmem:[%s1] sm:$0xff]
    %v48 = vld [vmem:[%s1 + $0x8] sm:$0xff]
    %v49 = vld [vmem:[%s1 + $0x10] sm:$0xff]
    %v50 = vld [vmem:[%s1 + $0x18] sm:$0xff]
    %v51 = vld [vmem:[%s1 + $0x20] sm:$0xff]
    %v52 = vld [vmem:[%s1 + $0x28] sm:$0xff]
    %v53 = vld [vmem:[%s1 + $0x30] sm:$0xff]
    %v54 = vld [vmem:[%s1 + $0x38] sm:$0xff]
    %v55 = vld [vmem:[%s1 + $0x40] sm:$0xff]
    %v56 = vld [vmem:[%s1 + $0x48] sm:$0xff]
    %v57 = vld [vmem:[%s1 + $0x50] sm:$0xff]
    %v58 = vld [vmem:[%s1 + $0x58] sm:$0xff]
    %v59 = vld [vmem:[%s1 + $0x60] sm:$0xff]
    %v60 = vld [vmem:[%s1 + $0x68] sm:$0xff]
    %v61 = vld [vmem:[%s1 + $0x70] sm:$0xff]
    %v62 = vld [vmem:[%s1 + $0x78] sm:$0xff]
    %v63 = vld [vmem:[%s1 + $0x80] sm:$0xff]
    %v64 = vld [vmem:[%s1 + $0x88] sm:$0xff]
    %v65 = vld [vmem:[%s1 + $0x90] sm:$0xff]
    %v66 = vld [vmem:[%s1 + $0x98] sm:$0xff]
    %v67 = vld [vmem:[%s1 + $0xa0] sm:$0xff]
    %v68 = vld [vmem:[%s1 + $0xa8] sm:$0xff]
    %v69 = vld [vmem:[%s1 + $0xb0] sm:$0xff]
    %v70 = vld [vmem:[%s1 + $0xb8] sm:$0xff]
    %v71 = vld [vmem:[%s1 + $0xc0] sm:$0xff]
    %v72 = vld [vmem:[%s1 + $0xc8] sm:$0xff]
    %v73 = vld [vmem:[%s1 + $0xd0] sm:$0xff]
    %v74 = vld [vmem:[%s1 + $0xd8] sm:$0xff]
    %v75 = vld [vmem:[%s1 + $0xe0] sm:$0xff]
    %v76 = vld [vmem:[%s1 + $0xe8] sm:$0xff]
    %v77 = vld [vmem:[%s1 + $0xf0] sm:$0xff]
    %v78 = vld [vmem:[%s1 + $0xf8] sm:$0xff]
    %v79 = vld [vmem:[%s2] sm:$0x1]
    %v80 = vperm.slane %v79, 0
    %81 = vmatpush.msra.mxu0 %v62
    %82 = vmatpush.msra.mxu0 %v61
    %83 = vmatpush.msra.mxu0 %v60
    %84 = vmatpush.msra.mxu0 %v59
    %85 = vmatpush.msra.mxu0 %v58
    %86 = vmatpush.msra.mxu0 %v57
    %87 = vmatpush.msra.mxu0 %v56
    %88 = vmatpush.msra.mxu0 %v55
    %89 = vmatpush.msra.mxu0 %v54
    %90 = vmatpush.msra.mxu0 %v53
    %91 = vmatpush.msra.mxu0 %v52
    %92 = vmatpush.msra.mxu0 %v51
    %93 = vmatpush.msra.mxu0 %v50
    %94 = vmatpush.msra.mxu0 %v49
    %95 = vmatpush.msra.mxu0 %v48
    %96 = vmatpush.msra.mxu0 %v47
    %97 = vmatmul.f32.gmra.mxu0 %v15
    %v98 = vpop.f32.mrf.mxu0
    %v99 = vadd.f32 %v80, %v98
    %100 = vmatmul.f32.gmra.mxu0 %v17
    %v101 = vpop.f32.mrf.mxu0
    %v102 = vadd.f32 %v80, %v101
    %103 = vmatmul.f32.gmra.mxu0 %v19
    %v104 = vpop.f32.mrf.mxu0
    %v105 = vadd.f32 %v80, %v104
    %106 = vmatmul.f32.gmra.mxu0 %v21
    %v107 = vpop.f32.mrf.mxu0
    %v108 = vadd.f32 %v80, %v107
    %109 = vmatmul.f32.gmra.mxu0 %v23
    %v110 = vpop.f32.mrf.mxu0
    %v111 = vadd.f32 %v80, %v110
    %112 = vmatmul.f32.gmra.mxu0 %v25
    %v113 = vpop.f32.mrf.mxu0
    %v114 = vadd.f32 %v80, %v113
    %115 = vmatmul.f32.gmra.mxu0 %v27
    %v116 = vpop.f32.mrf.mxu0
    %v117 = vadd.f32 %v80, %v116
    %118 = vmatmul.f32.gmra.mxu0 %v29
    %v119 = vpop.f32.mrf.mxu0
    %v120 = vadd.f32 %v80, %v119
    %121 = vmatmul.f32.gmra.mxu0 %v31
    %v122 = vpop.f32.mrf.mxu0
    %v123 = vadd.f32 %v80, %v122
    %124 = vmatmul.f32.gmra.mxu0 %v33
    %v125 = vpop.f32.mrf.mxu0
    %v126 = vadd.f32 %v80, %v125
    %127 = vmatmul.f32.gmra.mxu0 %v35
    %v128 = vpop.f32.mrf.mxu0
    %v129 = vadd.f32 %v80, %v128
    %130 = vmatmul.f32.gmra.mxu0 %v37
    %v131 = vpop.f32.mrf.mxu0
    %v132 = vadd.f32 %v80, %v131
    %133 = vmatmul.f32.gmra.mxu0 %v39
    %v134 = vpop.f32.mrf.mxu0
    %v135 = vadd.f32 %v80, %v134
    %136 = vmatmul.f32.gmra.mxu0 %v41
    %v137 = vpop.f32.mrf.mxu0
    %v138 = vadd.f32 %v80, %v137
    %139 = vmatmul.f32.gmra.mxu0 %v43
    %v140 = vpop.f32.mrf.mxu0
    %v141 = vadd.f32 %v80, %v140
    %142 = vmatmul.f32.gmra.mxu0 %v45
    %v143 = vpop.f32.mrf.mxu0
    %v144 = vadd.f32 %v80, %v143
    %145 = vdwg.mxu0
    %146 = vmatpush.msra.mxu0 %v78
    %147 = vmatpush.msra.mxu0 %v77
    %148 = vmatpush.msra.mxu0 %v76
    %149 = vmatpush.msra.mxu0 %v75
    %150 = vmatpush.msra.mxu0 %v74
    %151 = vmatpush.msra.mxu0 %v73
    %152 = vmatpush.msra.mxu0 %v72
    %153 = vmatpush.msra.mxu0 %v71
    %154 = vmatpush.msra.mxu0 %v70
    %155 = vmatpush.msra.mxu0 %v69
    %156 = vmatpush.msra.mxu0 %v68
    %157 = vmatpush.msra.mxu0 %v67
    %158 = vmatpush.msra.mxu0 %v66
    %159 = vmatpush.msra.mxu0 %v65
    %160 = vmatpush.msra.mxu0 %v64
    %161 = vmatpush.msra.mxu0 %v63
    %162 = vmatmul.f32.gmra.mxu0 %v16
    %v163 = vpop.f32.mrf.mxu0
    %v164 = vadd.f32 %v99, %v163
    %165 = vmatmul.f32.gmra.mxu0 %v18
    %v166 = vpop.f32.mrf.mxu0
    %v167 = vadd.f32 %v102, %v166
    %168 = vmatmul.f32.gmra.mxu0 %v20
    %v169 = vpop.f32.mrf.mxu0
    %v170 = vadd.f32 %v105, %v169
    %171 = vmatmul.f32.gmra.mxu0 %v22
    %v172 = vpop.f32.mrf.mxu0
    %v173 = vadd.f32 %v108, %v172
    %174 = vmatmul.f32.gmra.mxu0 %v24
    %v175 = vpop.f32.mrf.mxu0
    %v176 = vadd.f32 %v111, %v175
    %177 = vmatmul.f32.gmra.mxu0 %v26
    %v178 = vpop.f32.mrf.mxu0
    %v179 = vadd.f32 %v114, %v178
    %180 = vmatmul.f32.gmra.mxu0 %v28
    %v181 = vpop.f32.mrf.mxu0
    %v182 = vadd.f32 %v117, %v181
    %183 = vmatmul.f32.gmra.mxu0 %v30
    %v184 = vpop.f32.mrf.mxu0
    %v185 = vadd.f32 %v120, %v184
    %186 = vmatmul.f32.gmra.mxu0 %v32
    %v187 = vpop.f32.mrf.mxu0
    %v188 = vadd.f32 %v123, %v187
    %189 = vmatmul.f32.gmra.mxu0 %v34
    %v190 = vpop.f32.mrf.mxu0
    %v191 = vadd.f32 %v126, %v190
    %192 = vmatmul.f32.gmra.mxu0 %v36
    %v193 = vpop.f32.mrf.mxu0
    %v194 = vadd.f32 %v129, %v193
    %195 = vmatmul.f32.gmra.mxu0 %v38
    %v196 = vpop.f32.mrf.mxu0
    %v197 = vadd.f32 %v132, %v196
    %198 = vmatmul.f32.gmra.mxu0 %v40
    %v199 = vpop.f32.mrf.mxu0
    %v200 = vadd.f32 %v135, %v199
    %201 = vmatmul.f32.gmra.mxu0 %v42
    %v202 = vpop.f32.mrf.mxu0
    %v203 = vadd.f32 %v138, %v202
    %204 = vmatmul.f32.gmra.mxu0 %v44
    %v205 = vpop.f32.mrf.mxu0
    %v206 = vadd.f32 %v141, %v205
    %207 = vmatmul.f32.gmra.mxu0 %v46
    %v208 = vpop.f32.mrf.mxu0
    %v209 = vadd.f32 %v144, %v208
    %210 = vdwg.mxu0
    %211 = vadd.xlane.f32.xlu0 %v164
    %v212 = vpop.xlane.xlu0 %211
    %213 = vadd.xlane.f32.xlu0 %v167
    %v214 = vpop.xlane.xlu0 %213
    %215 = vadd.xlane.f32.xlu0 %v170
    %v216 = vpop.xlane.xlu0 %215
    %217 = vadd.xlane.f32.xlu0 %v173
    %v218 = vpop.xlane.xlu0 %217
    %219 = vadd.xlane.f32.xlu0 %v176
    %v220 = vpop.xlane.xlu0 %219
    %221 = vadd.xlane.f32.xlu0 %v179
    %v222 = vpop.xlane.xlu0 %221
    %223 = vadd.xlane.f32.xlu0 %v182
    %v224 = vpop.xlane.xlu0 %223
    %225 = vadd.xlane.f32.xlu0 %v185
    %v226 = vpop.xlane.xlu0 %225
    %227 = vadd.xlane.f32.xlu0 %v188
    %v228 = vpop.xlane.xlu0 %227
    %229 = vadd.xlane.f32.xlu0 %v191
    %v230 = vpop.xlane.xlu0 %229
    %231 = vadd.xlane.f32.xlu0 %v194
    %v232 = vpop.xlane.xlu0 %231
    %233 = vadd.xlane.f32.xlu0 %v197
    %v234 = vpop.xlane.xlu0 %233
    %235 = vadd.xlane.f32.xlu0 %v200
    %v236 = vpop.xlane.xlu0 %235
    %237 = vadd.xlane.f32.xlu0 %v203
    %v238 = vpop.xlane.xlu0 %237
    %239 = vadd.xlane.f32.xlu0 %v206
    %v240 = vpop.xlane.xlu0 %239
    %241 = vadd.xlane.f32.xlu0 %v209
    %v242 = vpop.xlane.xlu0 %241
    %v243 = vmul.f32 %v212, 0.0078125
    %v244 = vmul.f32 %v214, 0.0078125
    %v245 = vmul.f32 %v216, 0.0078125
    %v246 = vmul.f32 %v218, 0.0078125
    %v247 = vmul.f32 %v220, 0.0078125
    %v248 = vmul.f32 %v222, 0.0078125
    %v249 = vmul.f32 %v224, 0.0078125
    %v250 = vmul.f32 %v226, 0.0078125
    %v251 = vmul.f32 %v228, 0.0078125
    %v252 = vmul.f32 %v230, 0.0078125
    %v253 = vmul.f32 %v232, 0.0078125
    %v254 = vmul.f32 %v234, 0.0078125
    %v255 = vmul.f32 %v236, 0.0078125
    %v256 = vmul.f32 %v238, 0.0078125
    %v257 = vmul.f32 %v240, 0.0078125
    %v258 = vmul.f32 %v242, 0.0078125
    %v259 = vmul.f32 %v164, %v164
    %v260 = vmul.f32 %v167, %v167
    %v261 = vmul.f32 %v170, %v170
    %v262 = vmul.f32 %v173, %v173
    %v263 = vmul.f32 %v176, %v176
    %v264 = vmul.f32 %v179, %v179
    %v265 = vmul.f32 %v182, %v182
    %v266 = vmul.f32 %v185, %v185
    %v267 = vmul.f32 %v188, %v188
    %v268 = vmul.f32 %v191, %v191
    %v269 = vmul.f32 %v194, %v194
    %v270 = vmul.f32 %v197, %v197
    %v271 = vmul.f32 %v200, %v200
    %v272 = vmul.f32 %v203, %v203
    %v273 = vmul.f32 %v206, %v206
    %v274 = vmul.f32 %v209, %v209
    %275 = vadd.xlane.f32.xlu0 %v259
    %v276 = vpop.xlane.xlu0 %275
    %277 = vadd.xlane.f32.xlu0 %v260
    %v278 = vpop.xlane.xlu0 %277
    %279 = vadd.xlane.f32.xlu0 %v261
    %v280 = vpop.xlane.xlu0 %279
    %281 = vadd.xlane.f32.xlu0 %v262
    %v282 = vpop.xlane.xlu0 %281
    %283 = vadd.xlane.f32.xlu0 %v263
    %v284 = vpop.xlane.xlu0 %283
    %285 = vadd.xlane.f32.xlu0 %v264
    %v286 = vpop.xlane.xlu0 %285
    %287 = vadd.xlane.f32.xlu0 %v265
    %v288 = vpop.xlane.xlu0 %287
    %289 = vadd.xlane.f32.xlu0 %v266
    %v290 = vpop.xlane.xlu0 %289
    %291 = vadd.xlane.f32.xlu0 %v267
    %v292 = vpop.xlane.xlu0 %291
    %293 = vadd.xlane.f32.xlu0 %v268
    %v294 = vpop.xlane.xlu0 %293
    %295 = vadd.xlane.f32.xlu0 %v269
    %v296 = vpop.xlane.xlu0 %295
    %297 = vadd.xlane.f32.xlu0 %v270
    %v298 = vpop.xlane.xlu0 %297
    %299 = vadd.xlane.f32.xlu0 %v271
    %v300 = vpop.xlane.xlu0 %299
    %301 = vadd.xlane.f32.xlu0 %v272
    %v302 = vpop.xlane.xlu0 %301
    %303 = vadd.xlane.f32.xlu0 %v273
    %v304 = vpop.xlane.xlu0 %303
    %305 = vadd.xlane.f32.xlu0 %v274
    %v306 = vpop.xlane.xlu0 %305
    %v307 = vmul.f32 %v276, 0.0078125
    %v308 = vmul.f32 %v278, 0.0078125
    %v309 = vmul.f32 %v280, 0.0078125
    %v310 = vmul.f32 %v282, 0.0078125
    %v311 = vmul.f32 %v284, 0.0078125
    %v312 = vmul.f32 %v286, 0.0078125
    %v313 = vmul.f32 %v288, 0.0078125
    %v314 = vmul.f32 %v290, 0.0078125
    %v315 = vmul.f32 %v292, 0.0078125
    %v316 = vmul.f32 %v294, 0.0078125
    %v317 = vmul.f32 %v296, 0.0078125
    %v318 = vmul.f32 %v298, 0.0078125
    %v319 = vmul.f32 %v300, 0.0078125
    %v320 = vmul.f32 %v302, 0.0078125
    %v321 = vmul.f32 %v304, 0.0078125
    %v322 = vmul.f32 %v306, 0.0078125
    %v323 = vmul.f32 %v243, %v243
    %v324 = vmul.f32 %v244, %v244
    %v325 = vmul.f32 %v245, %v245
    %v326 = vmul.f32 %v246, %v246
    %v327 = vmul.f32 %v247, %v247
    %v328 = vmul.f32 %v248, %v248
    %v329 = vmul.f32 %v249, %v249
    %v330 = vmul.f32 %v250, %v250
    %v331 = vmul.f32 %v251, %v251
    %v332 = vmul.f32 %v252, %v252
    %v333 = vmul.f32 %v253, %v253
    %v334 = vmul.f32 %v254, %v254
    %v335 = vmul.f32 %v255, %v255
    %v336 = vmul.f32 %v256, %v256
    %v337 = vmul.f32 %v257, %v257
    %v338 = vmul.f32 %v258, %v258
    %v339 = vsub.f32 %v307, %v323
    %v340 = vsub.f32 %v308, %v324
    %v341 = vsub.f32 %v309, %v325
    %v342 = vsub.f32 %v310, %v326
    %v343 = vsub.f32 %v311, %v327
    %v344 = vsub.f32 %v312, %v328
    %v345 = vsub.f32 %v313, %v329
    %v346 = vsub.f32 %v314, %v330
    %v347 = vsub.f32 %v315, %v331
    %v348 = vsub.f32 %v316, %v332
    %v349 = vsub.f32 %v317, %v333
    %v350 = vsub.f32 %v318, %v334
    %v351 = vsub.f32 %v319, %v335
    %v352 = vsub.f32 %v320, %v336
    %v353 = vsub.f32 %v321, %v337
    %v354 = vsub.f32 %v322, %v338
    %v355 = vsub.f32 %v164, %v243
    %v356 = vsub.f32 %v167, %v244
    %v357 = vsub.f32 %v170, %v245
    %v358 = vsub.f32 %v173, %v246
    %v359 = vsub.f32 %v176, %v247
    %v360 = vsub.f32 %v179, %v248
    %v361 = vsub.f32 %v182, %v249
    %v362 = vsub.f32 %v185, %v250
    %v363 = vsub.f32 %v188, %v251
    %v364 = vsub.f32 %v191, %v252
    %v365 = vsub.f32 %v194, %v253
    %v366 = vsub.f32 %v197, %v254
    %v367 = vsub.f32 %v200, %v255
    %v368 = vsub.f32 %v203, %v256
    %v369 = vsub.f32 %v206, %v257
    %v370 = vsub.f32 %v209, %v258
    %v371 = vadd.f32 %v339, 1e-05
    %v372 = vadd.f32 %v340, 1e-05
    %v373 = vadd.f32 %v341, 1e-05
    %v374 = vadd.f32 %v342, 1e-05
    %v375 = vadd.f32 %v343, 1e-05
    %v376 = vadd.f32 %v344, 1e-05
    %v377 = vadd.f32 %v345, 1e-05
    %v378 = vadd.f32 %v346, 1e-05
    %v379 = vadd.f32 %v347, 1e-05
    %v380 = vadd.f32 %v348, 1e-05
    %v381 = vadd.f32 %v349, 1e-05
    %v382 = vadd.f32 %v350, 1e-05
    %v383 = vadd.f32 %v351, 1e-05
    %v384 = vadd.f32 %v352, 1e-05
    %v385 = vadd.f32 %v353, 1e-05
    %v386 = vadd.f32 %v354, 1e-05
    %v387 = vrsqrt.pop %v371
    %v388 = vmul.f32 %v387, %v371
    %v389 = vmul.f32 %v388, %v387
    %v390 = vmul.f32 0.5, %v389
    %v391 = vsub.f32 1.5, %v390
    %v392 = vmul.f32 %v387, %v391
    %vm393 = vweird.f32 %v371
    %vm394 = vweird.f32 %v387
    %vm395 = vmor %vm393, %vm394
    %v396 = vsel %vm395, %v387, %v392
    %v397 = vrsqrt.pop %v372
    %v398 = vmul.f32 %v397, %v372
    %v399 = vmul.f32 %v398, %v397
    %v400 = vmul.f32 0.5, %v399
    %v401 = vsub.f32 1.5, %v400
    %v402 = vmul.f32 %v397, %v401
    %vm403 = vweird.f32 %v372
    %vm404 = vweird.f32 %v397
    %vm405 = vmor %vm403, %vm404
    %v406 = vsel %vm405, %v397, %v402
    %v407 = vrsqrt.pop %v373
    %v408 = vmul.f32 %v407, %v373
    %v409 = vmul.f32 %v408, %v407
    %v410 = vmul.f32 0.5, %v409
    %v411 = vsub.f32 1.5, %v410
    %v412 = vmul.f32 %v407, %v411
    %vm413 = vweird.f32 %v373
    %vm414 = vweird.f32 %v407
    %vm415 = vmor %vm413, %vm414
    %v416 = vsel %vm415, %v407, %v412
    %v417 = vrsqrt.pop %v374
    %v418 = vmul.f32 %v417, %v374
    %v419 = vmul.f32 %v418, %v417
    %v420 = vmul.f32 0.5, %v419
    %v421 = vsub.f32 1.5, %v420
    %v422 = vmul.f32 %v417, %v421
    %vm423 = vweird.f32 %v374
    %vm424 = vweird.f32 %v417
    %vm425 = vmor %vm423, %vm424
    %v426 = vsel %vm425, %v417, %v422
    %v427 = vrsqrt.pop %v375
    %v428 = vmul.f32 %v427, %v375
    %v429 = vmul.f32 %v428, %v427
    %v430 = vmul.f32 0.5, %v429
    %v431 = vsub.f32 1.5, %v430
    %v432 = vmul.f32 %v427, %v431
    %vm433 = vweird.f32 %v375
    %vm434 = vweird.f32 %v427
    %vm435 = vmor %vm433, %vm434
    %v436 = vsel %vm435, %v427, %v432
    %v437 = vrsqrt.pop %v376
    %v438 = vmul.f32 %v437, %v376
    %v439 = vmul.f32 %v438, %v437
    %v440 = vmul.f32 0.5, %v439
    %v441 = vsub.f32 1.5, %v440
    %v442 = vmul.f32 %v437, %v441
    %vm443 = vweird.f32 %v376
    %vm444 = vweird.f32 %v437
    %vm445 = vmor %vm443, %vm444
    %v446 = vsel %vm445, %v437, %v442
    %v447 = vrsqrt.pop %v377
    %v448 = vmul.f32 %v447, %v377
    %v449 = vmul.f32 %v448, %v447
    %v450 = vmul.f32 0.5, %v449
    %v451 = vsub.f32 1.5, %v450
    %v452 = vmul.f32 %v447, %v451
    %vm453 = vweird.f32 %v377
    %vm454 = vweird.f32 %v447
    %vm455 = vmor %vm453, %vm454
    %v456 = vsel %vm455, %v447, %v452
    %v457 = vrsqrt.pop %v378
    %v458 = vmul.f32 %v457, %v378
    %v459 = vmul.f32 %v458, %v457
    %v460 = vmul.f32 0.5, %v459
    %v461 = vsub.f32 1.5, %v460
    %v462 = vmul.f32 %v457, %v461
    %vm463 = vweird.f32 %v378
    %vm464 = vweird.f32 %v457
    %vm465 = vmor %vm463, %vm464
    %v466 = vsel %vm465, %v457, %v462
    %v467 = vrsqrt.pop %v379
    %v468 = vmul.f32 %v467, %v379
    %v469 = vmul.f32 %v468, %v467
    %v470 = vmul.f32 0.5, %v469
    %v471 = vsub.f32 1.5, %v470
    %v472 = vmul.f32 %v467, %v471
    %vm473 = vweird.f32 %v379
    %vm474 = vweird.f32 %v467
    %vm475 = vmor %vm473, %vm474
    %v476 = vsel %vm475, %v467, %v472
    %v477 = vrsqrt.pop %v380
    %v478 = vmul.f32 %v477, %v380
    %v479 = vmul.f32 %v478, %v477
    %v480 = vmul.f32 0.5, %v479
    %v481 = vsub.f32 1.5, %v480
    %v482 = vmul.f32 %v477, %v481
    %vm483 = vweird.f32 %v380
    %vm484 = vweird.f32 %v477
    %vm485 = vmor %vm483, %vm484
    %v486 = vsel %vm485, %v477, %v482
    %v487 = vrsqrt.pop %v381
    %v488 = vmul.f32 %v487, %v381
    %v489 = vmul.f32 %v488, %v487
    %v490 = vmul.f32 0.5, %v489
    %v491 = vsub.f32 1.5, %v490
    %v492 = vmul.f32 %v487, %v491
    %vm493 = vweird.f32 %v381
    %vm494 = vweird.f32 %v487
    %vm495 = vmor %vm493, %vm494
    %v496 = vsel %vm495, %v487, %v492
    %v497 = vrsqrt.pop %v382
    %v498 = vmul.f32 %v497, %v382
    %v499 = vmul.f32 %v498, %v497
    %v500 = vmul.f32 0.5, %v499
    %v501 = vsub.f32 1.5, %v500
    %v502 = vmul.f32 %v497, %v501
    %vm503 = vweird.f32 %v382
    %vm504 = vweird.f32 %v497
    %vm505 = vmor %vm503, %vm504
    %v506 = vsel %vm505, %v497, %v502
    %v507 = vrsqrt.pop %v383
    %v508 = vmul.f32 %v507, %v383
    %v509 = vmul.f32 %v508, %v507
    %v510 = vmul.f32 0.5, %v509
    %v511 = vsub.f32 1.5, %v510
    %v512 = vmul.f32 %v507, %v511
    %vm513 = vweird.f32 %v383
    %vm514 = vweird.f32 %v507
    %vm515 = vmor %vm513, %vm514
    %v516 = vsel %vm515, %v507, %v512
    %v517 = vrsqrt.pop %v384
    %v518 = vmul.f32 %v517, %v384
    %v519 = vmul.f32 %v518, %v517
    %v520 = vmul.f32 0.5, %v519
    %v521 = vsub.f32 1.5, %v520
    %v522 = vmul.f32 %v517, %v521
    %vm523 = vweird.f32 %v384
    %vm524 = vweird.f32 %v517
    %vm525 = vmor %vm523, %vm524
    %v526 = vsel %vm525, %v517, %v522
    %v527 = vrsqrt.pop %v385
    %v528 = vmul.f32 %v527, %v385
    %v529 = vmul.f32 %v528, %v527
    %v530 = vmul.f32 0.5, %v529
    %v531 = vsub.f32 1.5, %v530
    %v532 = vmul.f32 %v527, %v531
    %vm533 = vweird.f32 %v385
    %vm534 = vweird.f32 %v527
    %vm535 = vmor %vm533, %vm534
    %v536 = vsel %vm535, %v527, %v532
    %v537 = vrsqrt.pop %v386
    %v538 = vmul.f32 %v537, %v386
    %v539 = vmul.f32 %v538, %v537
    %v540 = vmul.f32 0.5, %v539
    %v541 = vsub.f32 1.5, %v540
    %v542 = vmul.f32 %v537, %v541
    %vm543 = vweird.f32 %v386
    %vm544 = vweird.f32 %v537
    %vm545 = vmor %vm543, %vm544
    %v546 = vsel %vm545, %v537, %v542
    %v547 = vmul.f32 %v355, %v396
    %v548 = vmul.f32 %v356, %v406
    %v549 = vmul.f32 %v357, %v416
    %v550 = vmul.f32 %v358, %v426
    %v551 = vmul.f32 %v359, %v436
    %v552 = vmul.f32 %v360, %v446
    %v553 = vmul.f32 %v361, %v456
    %v554 = vmul.f32 %v362, %v466
    %v555 = vmul.f32 %v363, %v476
    %v556 = vmul.f32 %v364, %v486
    %v557 = vmul.f32 %v365, %v496
    %v558 = vmul.f32 %v366, %v506
    %v559 = vmul.f32 %v367, %v516
    %v560 = vmul.f32 %v368, %v526
    %v561 = vmul.f32 %v369, %v536
    %v562 = vmul.f32 %v370, %v546
    %v563 = vld [vmem:[%s2 + $0x1] sm:$0x1]
    %v564 = vperm.slane %v563, 0
    %v565 = vmul.f32 %v547, %v564
    %v566 = vmul.f32 %v548, %v564
    %v567 = vmul.f32 %v549, %v564
    %v568 = vmul.f32 %v550, %v564
    %v569 = vmul.f32 %v551, %v564
    %v570 = vmul.f32 %v552, %v564
    %v571 = vmul.f32 %v553, %v564
    %v572 = vmul.f32 %v554, %v564
    %v573 = vmul.f32 %v555, %v564
    %v574 = vmul.f32 %v556, %v564
    %v575 = vmul.f32 %v557, %v564
    %v576 = vmul.f32 %v558, %v564
    %v577 = vmul.f32 %v559, %v564
    %v578 = vmul.f32 %v560, %v564
    %v579 = vmul.f32 %v561, %v564
    %v580 = vmul.f32 %v562, %v564
    %v581 = vld [vmem:[%s2 + $0x2] sm:$0x1]
    %v582 = vperm.slane %v581, 0
    %v583 = vadd.f32 %v565, %v582
    %v584 = vadd.f32 %v566, %v582
    %v585 = vadd.f32 %v567, %v582
    %v586 = vadd.f32 %v568, %v582
    %v587 = vadd.f32 %v569, %v582
    %v588 = vadd.f32 %v570, %v582
    %v589 = vadd.f32 %v571, %v582
    %v590 = vadd.f32 %v572, %v582
    %v591 = vadd.f32 %v573, %v582
    %v592 = vadd.f32 %v574, %v582
    %v593 = vadd.f32 %v575, %v582
    %v594 = vadd.f32 %v576, %v582
    %v595 = vadd.f32 %v577, %v582
    %v596 = vadd.f32 %v578, %v582
    %v597 = vadd.f32 %v579, %v582
    %v598 = vadd.f32 %v580, %v582
    %599 = vst [vmem:[#allocation2] sm:$0xff] %v583
    %600 = vst [vmem:[#allocation2 + $0x8] sm:$0xff] %v584
    %601 = vst [vmem:[#allocation2 + $0x10] sm:$0xff] %v585
    %602 = vst [vmem:[#allocation2 + $0x18] sm:$0xff] %v586
    %603 = vst [vmem:[#allocation2 + $0x20] sm:$0xff] %v587
    %604 = vst [vmem:[#allocation2 + $0x28] sm:$0xff] %v588
    %605 = vst [vmem:[#allocation2 + $0x30] sm:$0xff] %v589
    %606 = vst [vmem:[#allocation2 + $0x38] sm:$0xff] %v590
    %607 = vst [vmem:[#allocation2 + $0x40] sm:$0xff] %v591
    %608 = vst [vmem:[#allocation2 + $0x48] sm:$0xff] %v592
    %609 = vst [vmem:[#allocation2 + $0x50] sm:$0xff] %v593
    %610 = vst [vmem:[#allocation2 + $0x58] sm:$0xff] %v594
    %611 = vst [vmem:[#allocation2 + $0x60] sm:$0xff] %v595
    %612 = vst [vmem:[#allocation2 + $0x68] sm:$0xff] %v596
    %613 = vst [vmem:[#allocation2 + $0x70] sm:$0xff] %v597
    %614 = vst [vmem:[#allocation2 + $0x78] sm:$0xff] %v598
    // Predicated region
    $region14: #{overlap_patch_embed.1} parent=1 // pred_check
      _
    $region15: #{overlap_patch_embed.1} parent=1 // pred_check_branch
      %616 = sbr.rel (0) target = $region17
    $region16: #{overlap_patch_embed.1} parent=1 // pred_region
      %618 = vsyncadd [#allocation3], 0
      %s619 = sshll.u32 [#allocation2], 4
      %s620 = int_to_ptr.vmem [resolvable:$true] %s619
      %s621 = sshll.u32 %s3, 4
      %s622 = int_to_ptr.hbm [resolvable:$true] %s621
      %627 = dma.vmem_to_hbm [thread:$0]  %s620, 2048, %s622, [#allocation3], 128, 128, 8
    $region17: #{overlap_patch_embed.1} parent=1 // pred_fallthru
      _
    // Predicated region
    $region18: #{overlap_patch_embed.1} parent=1 // pred_check
      _
    $region19: #{overlap_patch_embed.1} parent=1 // pred_check_branch
      %629 = sbr.rel (0) target = $region21
    $region20: #{overlap_patch_embed.1} parent=1 // pred_region
      %631 = dma.done [#allocation3], 2048
    $region21: #{overlap_patch_embed.1} parent=1 // pred_fallthru
      _
    %632 = vsyncpa [#allocation3], 1

</llo_original>
